<compile_context>
chip_gen: v5e
topology: v5e:2x2
jax: 0.10.0
libtpu: 0.0.40
codegen_flags: <defaults>
</compile_context>

<pallas_src>
import functools

import numpy as np
import jax
import jax.numpy as jnp
from jax.experimental import pallas as pl
from jax.experimental.pallas import tpu as pltpu

_LANES = 128
_VMEM_LIMIT_BYTES = 32 * 1024 * 1024       # explicit scoped-VMEM request (safe on v5e/v6e/v7x)
_PIPELINE_BUDGET_BYTES = 20 * 1024 * 1024  # budget for double-buffered in+out blocks


def _round_up(x, m):
    return ((x + m - 1) // m) * m


def _cdiv(a, b):
    return -(-a // b)


def _device_profile():
    """(min_grid_steps, tm_cap) for the local TPU generation."""
    kind = ""
    try:
        kind = (getattr(jax.devices()[0], "device_kind", "") or "").lower()
    except Exception:
        pass
    is_v7 = "v7" in kind
    # v7x: 2 TensorCores/chip -> keep an even (>=2) step count and larger tiles
    # (3.2 TB/s HBM makes per-step overhead relatively larger).
    # v5e/v6e: 1 TC -> a single step is best when the slab fits.
    return (2 if is_v7 else 1), (1024 if is_v7 else 512)


# ---------------------------------------------------------------------------
# numpy anchor-grid generation (numpy in the reference module as well).
# ---------------------------------------------------------------------------
def enum_ratios_and_thetas2(anchors, anchor_ratios, anchor_angles):
    a_ws = anchors[:, 2]
    a_hs = anchors[:, 3]
    sqrt_ratios = np.sqrt(anchor_ratios)
    ws = np.reshape(a_ws / sqrt_ratios[:, None], -1)
    hs = np.reshape(a_hs * sqrt_ratios[:, None], -1)
    ws, _ = np.meshgrid(ws, anchor_angles)
    hs, anchor_angles = np.meshgrid(hs, anchor_angles)
    anchor_angles = np.reshape(anchor_angles, [-1, 1])
    ws = np.reshape(ws, [-1, 1])
    hs = np.reshape(hs, [-1, 1])
    return (hs, ws, anchor_angles)


def generate_anchors(anchor_sizes, anchor_ratios, anchor_angles, height, width,
                     stride, make_width_larger=True):
    N_sizes = len(anchor_sizes)
    base_anchors = np.zeros((N_sizes, 4), np.float32)
    base_anchors[:, 2] = anchor_sizes
    base_anchors[:, 3] = anchor_sizes
    ws, hs, angles = enum_ratios_and_thetas2(base_anchors, anchor_ratios, anchor_angles)
    x_centers = np.arange(width, dtype=np.float32) * stride + stride // 2
    y_centers = np.arange(height, dtype=np.float32) * stride + stride // 2
    x_centers, y_centers = np.meshgrid(x_centers, y_centers)
    angles, _ = np.meshgrid(angles, x_centers)
    ws, x_centers = np.meshgrid(ws, x_centers)
    hs, y_centers = np.meshgrid(hs, y_centers)
    anchor_centers = np.stack([x_centers, y_centers], 2)
    anchor_centers = np.reshape(anchor_centers, [-1, 2])
    box_parameters = np.stack([ws, hs, angles], axis=2)
    box_parameters = np.reshape(box_parameters, [-1, 3])
    anchors = np.concatenate([anchor_centers, box_parameters], axis=1)
    if make_width_larger:
        h_gt_w = anchors[:, 3] >= anchors[:, 2]
        anchors[h_gt_w, 2:4] = anchors[h_gt_w, 2:4][:, :-1]
        anchors[h_gt_w, -1] -= 90
        anchors[anchors[:, -1] < -90, -1] += 180
        anchors[anchors[:, -1] > 90, -1] -= 180
    return anchors


# numpy reference for the bbox math (verification only).
def _ref_rects_to_bboxes_np(rects):
    N = len(rects)
    rect_pts = np.zeros((N, 4, 2), dtype=np.float32)
    cx, cy, w, h = rects[:, 0], rects[:, 1], rects[:, 2], rects[:, 3]
    angle = rects[:, 4] / 180.0 * np.pi
    b = np.cos(angle) * 0.5
    a = np.sin(angle) * 0.5
    rect_pts[:, 0, 0] = cx - a * h - b * w
    rect_pts[:, 0, 1] = cy + b * h - a * w
    rect_pts[:, 1, 0] = cx + a * h - b * w
    rect_pts[:, 1, 1] = cy - b * h - a * w
    rect_pts[:, 2, 0] = 2 * cx - rect_pts[:, 0, 0]
    rect_pts[:, 2, 1] = 2 * cy - rect_pts[:, 0, 1]
    rect_pts[:, 3, 0] = 2 * cx - rect_pts[:, 1, 0]
    rect_pts[:, 3, 1] = 2 * cy - rect_pts[:, 1, 1]
    pts_min = rect_pts.min(axis=1)
    pts_max = rect_pts.max(axis=1)
    return np.concatenate([pts_min, pts_max], axis=1)


# ---------------------------------------------------------------------------
# Pallas kernels
# ---------------------------------------------------------------------------
def _corners_minmax(rr_ref):
    # rr_ref block is (6, TM, 128); each row read is a dense (TM, 128) tile.
    cx = rr_ref[0]
    cy = rr_ref[1]
    w = rr_ref[2]
    h = rr_ref[3]
    a = rr_ref[4]   # sin(angle) * 0.5   (host-precomputed, EUP work removed)
    b = rr_ref[5]   # cos(angle) * 0.5
    # Corner symmetry: x offsets are +/-a*h +/- b*w, y offsets are +/-b*h +/- a*w.
    ex = jnp.abs(a * h) + jnp.abs(b * w)
    ey = jnp.abs(b * h) + jnp.abs(a * w)
    return cx - ex, cy - ey, cx + ex, cy + ey


def _bbox_kernel(rr_ref, bbox_ref):
    xmin, ymin, xmax, ymax = _corners_minmax(rr_ref)
    bbox_ref[0] = xmin
    bbox_ref[1] = ymin
    bbox_ref[2] = xmax
    bbox_ref[3] = ymax


def _vis_kernel(dims_ref, bbox_ref, vis_ref, *, num_images):
    # dims_ref (SMEM, f32, shape (num_images+1, 2)):
    #   row 0       : (-thr, -thr)
    #   row 1 + img : (image_width + thr, image_height + thr)
    # vis_ref: (num_planes, TM, 128) uint32 bitmask; bit j of plane p = image p*32+j.
    xmin = bbox_ref[0]
    ymin = bbox_ref[1]
    xmax = bbox_ref[2]
    ymax = bbox_ref[3]
    neg_thr = dims_ref[0, 0]
    base = (xmin >= neg_thr) & (ymin >= neg_thr)
    num_planes = vis_ref.shape[0]
    for p in range(num_planes):
        bits = jnp.zeros(xmin.shape, jnp.uint32)
        for j in range(min(32, num_images - p * 32)):
            img = p * 32 + j
            lim_w = dims_ref[img + 1, 0]
            lim_h = dims_ref[img + 1, 1]
            inside = base & (xmax < lim_w) & (ymax < lim_h)
            bits = bits | (inside.astype(jnp.uint32) * jnp.uint32(1 << j))
        vis_ref[p] = bits


# ---------------------------------------------------------------------------
# Tiling / pallas_call wrappers
# ---------------------------------------------------------------------------
def _choose_tiling(n_rows, total_planes, min_steps, tm_cap):
    # Double-buffered f32 block bytes per (128-lane) row across all in+out planes.
    bytes_per_row = 2 * total_planes * _LANES * 4
    tm_budget = max(8, (_PIPELINE_BUDGET_BYTES // bytes_per_row) // 8 * 8)
    tm_max = max(8, min(tm_cap, tm_budget))
    steps = max(min_steps, _cdiv(n_rows, tm_max))
    if steps % min_steps:
        steps += min_steps - steps % min_steps
    tm = min(tm_max, _round_up(_cdiv(n_rows, steps), 8))
    steps = max(steps, _cdiv(n_rows, tm))
    if steps % min_steps:
        steps += min_steps - steps % min_steps
    return tm, tm * steps, steps


def _run_bbox_kernel(rr_planes, tm, steps):
    n_rows_pad = tm * steps
    return pl.pallas_call(
        _bbox_kernel,
        out_shape=jax.ShapeDtypeStruct((4, n_rows_pad, _LANES), jnp.float32),
        grid_spec=pltpu.PrefetchScalarGridSpec(
            num_scalar_prefetch=0,
            grid=(steps,),
            in_specs=[pl.BlockSpec((6, tm, _LANES), lambda i: (0, i, 0))],
            out_specs=pl.BlockSpec((4, tm, _LANES), lambda i: (0, i, 0)),
        ),
        compiler_params=pltpu.CompilerParams(
            dimension_semantics=("parallel",),
            vmem_limit_bytes=_VMEM_LIMIT_BYTES),
    )(rr_planes)


def _build_vis_fn(level_meta, tm, steps, num_images):
    """Jitted (dims, bbox_planes) -> list of per-level (num_images, N) bool arrays."""
    n_rows_pad = tm * steps
    num_planes = _cdiv(num_images, 32)
    kernel = functools.partial(_vis_kernel, num_images=num_images)

    def run(dims, bbox_planes):
        vis_planes = pl.pallas_call(
            kernel,
            out_shape=jax.ShapeDtypeStruct((num_planes, n_rows_pad, _LANES), jnp.uint32),
            grid_spec=pltpu.PrefetchScalarGridSpec(
                num_scalar_prefetch=0,
                grid=(steps,),
                in_specs=[
                    pl.BlockSpec(memory_space=pltpu.MemorySpace.SMEM),
                    pl.BlockSpec((4, tm, _LANES), lambda i: (0, i, 0)),
                ],
                out_specs=pl.BlockSpec((num_planes, tm, _LANES), lambda i: (0, i, 0)),
            ),
            compiler_params=pltpu.CompilerParams(
                dimension_semantics=("parallel",),
                vmem_limit_bytes=_VMEM_LIMIT_BYTES),
        )(dims, bbox_planes)
        flat = vis_planes.reshape(num_planes, n_rows_pad * _LANES)
        per_level = []
        for (row_off, _n_rows_lvl, n_lvl) in level_meta:
            start = row_off * _LANES
            seg = flat[:, start:start + n_lvl]   # padded-tail anchors sliced off here
            imgs = []
            for img in range(num_images):
                p, j = divmod(img, 32)
                imgs.append(((seg[p] >> j) & jnp.uint32(1)).astype(jnp.bool_))
            per_level.append(jnp.stack(imgs, axis=0))
        return per_level

    return jax.jit(run)


# ---------------------------------------------------------------------------
# AnchorGenerator (forward-pass semantics of the PyTorch module)
# ---------------------------------------------------------------------------
class AnchorGenerator:
    def __init__(self, anchor_sizes=(128, 256, 512), aspect_ratios=(0.5, 1.0, 2.0),
                 anchor_strides=(16,), anchor_angles=(-90,), straddle_thresh=0,
                 make_width_larger=True):
        sizes = anchor_sizes
        if len(anchor_strides) == 1:
            self.anchor_sizes = [anchor_sizes]
        else:
            if len(anchor_strides) != len(sizes):
                raise RuntimeError("FPN should have #anchor_strides == #sizes")
            self.anchor_sizes = [[sz] for sz in anchor_sizes]
        self.anchor_angles = anchor_angles
        self.aspect_ratios = aspect_ratios
        self.strides = anchor_strides
        self.straddle_thresh = straddle_thresh
        self.make_width_larger = make_width_larger
        self._cache = {}  # tuple(grid_sizes) -> image-invariant per-config entry
        self._min_steps, self._tm_cap = _device_profile()

    def num_anchors_per_location(self):
        return [len(sizes) * len(self.aspect_ratios) * len(self.anchor_angles)
                for sizes in self.anchor_sizes]

    def _grid_anchors_np(self, grid_sizes):
        anchors = []
        for grid_size, stride, sizes in zip(grid_sizes, self.strides, self.anchor_sizes):
            h, w = grid_size[0], grid_size[1]
            anchors.append(generate_anchors(
                sizes, self.aspect_ratios, self.anchor_angles, h, w, stride,
                make_width_larger=self.make_width_larger))
        return anchors

    def grid_anchors(self, grid_sizes):
        return [jnp.asarray(a, jnp.float32) for a in self._grid_anchors_np(grid_sizes)]

    # ---- image-invariant, cached per tuple(grid_sizes) ----------------------
    def _get_level_pack(self, grid_sizes, num_images_hint):
        key = tuple(tuple(int(v) for v in gs) for gs in grid_sizes)
        entry = self._cache.get(key)
        if entry is not None:
            return entry

        anchors_np_per_level = self._grid_anchors_np(grid_sizes)

        # Concatenate all FPN levels row-wise (each level padded to whole 128-lane rows).
        level_meta = []
        total_rows = 0
        for a in anchors_np_per_level:
            n = int(a.shape[0])
            n_rows = _cdiv(n, _LANES) if n else 0
            level_meta.append((total_rows, n_rows, n))
            total_rows += n_rows

        num_planes_vis = max(1, _cdiv(max(1, num_images_hint), 32))
        total_planes = 6 + 4 + num_planes_vis  # worst case (bbox in / bbox+vis out)
        tm, n_rows_pad, steps = _choose_tiling(max(1, total_rows), total_planes,
                                               self._min_steps, self._tm_cap)

        planes = np.zeros((6, n_rows_pad * _LANES), np.float32)
        for (row_off, _n_rows, n), a in zip(level_meta, anchors_np_per_level):
            if n == 0:
                continue
            s = row_off * _LANES
            planes[0, s:s + n] = a[:, 0]                       # cx
            planes[1, s:s + n] = a[:, 1]                       # cy
            planes[2, s:s + n] = a[:, 2]                       # w
            planes[3, s:s + n] = a[:, 3]                       # h
            ang = a[:, 4].astype(np.float32) / np.float32(180.0) * np.float32(np.pi)
            planes[4, s:s + n] = np.sin(ang).astype(np.float32) * np.float32(0.5)
            planes[5, s:s + n] = np.cos(ang).astype(np.float32) * np.float32(0.5)
        rr = jnp.asarray(planes.reshape(6, n_rows_pad, _LANES))

        bbox_planes = _run_bbox_kernel(rr, tm, steps)

        # (N,4) bboxes per level (one-time slice+transpose, then cached).
        bboxes, rrects = [], []
        bbox_flat = bbox_planes.reshape(4, n_rows_pad * _LANES)
        for (row_off, _n_rows, n), a in zip(level_meta, anchors_np_per_level):
            start = row_off * _LANES
            bboxes.append(bbox_flat[:, start:start + n].T)
            rrects.append(jnp.asarray(a, jnp.float32))

        entry = dict(level_meta=tuple(level_meta), tm=tm, steps=steps,
                     bbox_planes=bbox_planes, bboxes=bboxes, rrects=rrects,
                     vis_fns={})
        self._cache[key] = entry
        return entry

    def _get_vis_fn(self, entry, num_images):
        fn = entry["vis_fns"].get(num_images)
        if fn is None:
            fn = _build_vis_fn(entry["level_meta"], entry["tm"], entry["steps"], num_images)
            entry["vis_fns"][num_images] = fn
        return fn

    # ---- forward -------------------------------------------------------------
    def forward(self, image_sizes, feature_maps):
        # image_sizes: list of (image_height, image_width), or an ImageList-like
        if hasattr(image_sizes, "image_sizes"):
            image_sizes = image_sizes.image_sizes
        image_sizes = [tuple(s) for s in image_sizes]
        num_images = len(image_sizes)
        grid_sizes = [tuple(int(v) for v in fm.shape[-2:]) for fm in feature_maps]

        entry = self._get_level_pack(grid_sizes, num_images)

        if self.straddle_thresh >= 0 and num_images > 0:
            thr = float(self.straddle_thresh)
            dims_np = np.zeros((num_images + 1, 2), np.float32)
            dims_np[0, :] = -thr
            for i, (ih, iw) in enumerate(image_sizes):
                dims_np[i + 1, 0] = float(iw) + thr
                dims_np[i + 1, 1] = float(ih) + thr
            vis_fn = self._get_vis_fn(entry, num_images)
            vis_per_level = vis_fn(jnp.asarray(dims_np), entry["bbox_planes"])
        else:
            vis_per_level = None

        anchors = []
        for img_idx, (image_height, image_width) in enumerate(image_sizes):
            anchors_in_image = []
            for lvl, (rrects, bboxes) in enumerate(zip(entry["rrects"], entry["bboxes"])):
                if vis_per_level is None:   # straddle_thresh < 0
                    visibility = jnp.ones((rrects.shape[0],), dtype=jnp.bool_)
                else:
                    visibility = vis_per_level[lvl][img_idx]
                # TODO(synk): BoxList container has no Pallas/JAX equivalent; a plain
                # dict carries the same fields (bbox, rrects, visibility, size, mode).
                anchors_in_image.append({
                    "bbox": bboxes,
                    "rrects": rrects,
                    "visibility": visibility,
                    "size": (image_width, image_height),
                    "mode": "xyxy",
                })
            anchors.append(anchors_in_image)
        return anchors

    __call__ = forward


if __name__ == "__main__":
    key = jax.random.PRNGKey(0)

    # one feature level, batch=2, channels=4, 16x16 spatial (NCHW)
    feature_maps = [jax.random.normal(key, (2, 4, 16, 16), dtype=jnp.float32)]
    image_sizes = [(64, 64), (60, 56)]  # (H, W) per image

    gen = AnchorGenerator(
        anchor_sizes=(32, 64),
        aspect_ratios=(0.5, 1.0, 2.0),
        anchor_strides=(4,),
        anchor_angles=(-90, -45, 0, 45),
        straddle_thresh=0,
        make_width_larger=True,
    )

    anchors = gen(image_sizes, feature_maps)
    jax.block_until_ready(anchors[0][0]["bbox"])
    jax.block_until_ready(anchors[0][0]["visibility"])
    jax.block_until_ready(anchors[1][0]["visibility"])

    # second forward hits the per-grid-size cache (vis-only kernel on cached bbox planes)
    anchors2 = gen(image_sizes, feature_maps)
    jax.block_until_ready(anchors2[1][0]["visibility"])

    # verify bbox kernel against numpy reference
    rr_np = np.asarray(anchors[0][0]["rrects"])
    bbox_ref = _ref_rects_to_bboxes_np(rr_np)
    bbox_ker = np.asarray(anchors[0][0]["bbox"])
    np.testing.assert_allclose(bbox_ker, bbox_ref, rtol=1e-5, atol=1e-3)

    # verify bitmask visibility against the kernel's own bbox values (exact)
    for img_idx, (ih, iw) in enumerate(image_sizes):
        vis_ref = ((bbox_ker[:, 0] >= 0) & (bbox_ker[:, 1] >= 0)
                   & (bbox_ker[:, 2] < iw) & (bbox_ker[:, 3] < ih))
        np.testing.assert_array_equal(
            np.asarray(anchors[img_idx][0]["visibility"]), vis_ref)
        np.testing.assert_array_equal(
            np.asarray(anchors2[img_idx][0]["visibility"]), vis_ref)

    n_expected = 16 * 16 * 2 * 3 * 4
    assert anchors[0][0]["bbox"].shape == (n_expected, 4)
    assert anchors[0][0]["rrects"].shape == (n_expected, 5)
    assert anchors[0][0]["visibility"].dtype == jnp.bool_
    assert anchors[1][0]["size"] == (56, 60)

    # straddle_thresh < 0 path: bbox kernel only, visibility all ones
    gen_neg = AnchorGenerator(
        anchor_sizes=(32, 64), aspect_ratios=(0.5, 1.0, 2.0), anchor_strides=(4,),
        anchor_angles=(-90, -45, 0, 45), straddle_thresh=-1, make_width_larger=True)
    anchors_neg = gen_neg(image_sizes, feature_maps)
    jax.block_until_ready(anchors_neg[0][0]["bbox"])
    assert bool(jnp.all(anchors_neg[0][0]["visibility"]))

    print("KERNEL_OK")
</pallas_src>

<mosaic_0001>
module attributes {stable_mosaic.version = 11 : i64} {
  func.func @_bbox_kernel(%arg0: i32, %arg1: memref<6x48x128xf32, #tpu.memory_space<vmem>>, %arg2: memref<4x48x128xf32, #tpu.memory_space<vmem>>) attributes {dimension_semantics = [#tpu.dimension_semantics<parallel>], iteration_bounds = array<i64: 1>, scalar_prefetch = 0 : i64, scratch_operands = 0 : i64, tpu.core_type = #tpu.core_type<tc>, window_params = [{transform_indices = @transform_0, window_bounds = array<i64: 6, 48, 128>}, {transform_indices = @transform_1, window_bounds = array<i64: 4, 48, 128>}]} {
    %c0 = arith.constant 0 : index
    %c0_0 = arith.constant 0 : index
    %c0_1 = arith.constant 0 : index
    %0 = vector.load %arg1[%c0, %c0_0, %c0_1] : memref<6x48x128xf32, #tpu.memory_space<vmem>>, vector<1x48x128xf32>
    %1 = vector.shape_cast %0 : vector<1x48x128xf32> to vector<48x128xf32>
    %c1 = arith.constant 1 : index
    %c0_2 = arith.constant 0 : index
    %c0_3 = arith.constant 0 : index
    %2 = vector.load %arg1[%c1, %c0_2, %c0_3] : memref<6x48x128xf32, #tpu.memory_space<vmem>>, vector<1x48x128xf32>
    %3 = vector.shape_cast %2 : vector<1x48x128xf32> to vector<48x128xf32>
    %c2 = arith.constant 2 : index
    %c0_4 = arith.constant 0 : index
    %c0_5 = arith.constant 0 : index
    %4 = vector.load %arg1[%c2, %c0_4, %c0_5] : memref<6x48x128xf32, #tpu.memory_space<vmem>>, vector<1x48x128xf32>
    %5 = vector.shape_cast %4 : vector<1x48x128xf32> to vector<48x128xf32>
    %c3 = arith.constant 3 : index
    %c0_6 = arith.constant 0 : index
    %c0_7 = arith.constant 0 : index
    %6 = vector.load %arg1[%c3, %c0_6, %c0_7] : memref<6x48x128xf32, #tpu.memory_space<vmem>>, vector<1x48x128xf32>
    %7 = vector.shape_cast %6 : vector<1x48x128xf32> to vector<48x128xf32>
    %c4 = arith.constant 4 : index
    %c0_8 = arith.constant 0 : index
    %c0_9 = arith.constant 0 : index
    %8 = vector.load %arg1[%c4, %c0_8, %c0_9] : memref<6x48x128xf32, #tpu.memory_space<vmem>>, vector<1x48x128xf32>
    %9 = vector.shape_cast %8 : vector<1x48x128xf32> to vector<48x128xf32>
    %c5 = arith.constant 5 : index
    %c0_10 = arith.constant 0 : index
    %c0_11 = arith.constant 0 : index
    %10 = vector.load %arg1[%c5, %c0_10, %c0_11] : memref<6x48x128xf32, #tpu.memory_space<vmem>>, vector<1x48x128xf32>
    %11 = vector.shape_cast %10 : vector<1x48x128xf32> to vector<48x128xf32>
    %12 = arith.mulf %9, %7 : vector<48x128xf32>
    %13 = math.absf %12 : vector<48x128xf32>
    %14 = arith.mulf %11, %5 : vector<48x128xf32>
    %15 = math.absf %14 : vector<48x128xf32>
    %16 = arith.addf %13, %15 : vector<48x128xf32>
    %17 = arith.mulf %11, %7 : vector<48x128xf32>
    %18 = math.absf %17 : vector<48x128xf32>
    %19 = arith.mulf %9, %5 : vector<48x128xf32>
    %20 = math.absf %19 : vector<48x128xf32>
    %21 = arith.addf %18, %20 : vector<48x128xf32>
    %22 = arith.subf %1, %16 : vector<48x128xf32>
    %23 = arith.subf %3, %21 : vector<48x128xf32>
    %24 = arith.addf %1, %16 : vector<48x128xf32>
    %25 = arith.addf %3, %21 : vector<48x128xf32>
    %c0_12 = arith.constant 0 : index
    %c0_13 = arith.constant 0 : index
    %c0_14 = arith.constant 0 : index
    %26 = vector.load %arg2[%c0_12, %c0_13, %c0_14] : memref<4x48x128xf32, #tpu.memory_space<vmem>>, vector<1x48x128xf32>
    %27 = vector.shape_cast %26 : vector<1x48x128xf32> to vector<48x128xf32>
    %28 = vector.shape_cast %22 : vector<48x128xf32> to vector<1x48x128xf32>
    tpu.vector_store %arg2[%c0_12, %c0_13, %c0_14], %28 {strides = array<i32>} : memref<4x48x128xf32, #tpu.memory_space<vmem>>, vector<1x48x128xf32>,
    %c1_15 = arith.constant 1 : index
    %c0_16 = arith.constant 0 : index
    %c0_17 = arith.constant 0 : index
    %29 = vector.load %arg2[%c1_15, %c0_16, %c0_17] : memref<4x48x128xf32, #tpu.memory_space<vmem>>, vector<1x48x128xf32>
    %30 = vector.shape_cast %29 : vector<1x48x128xf32> to vector<48x128xf32>
    %31 = vector.shape_cast %23 : vector<48x128xf32> to vector<1x48x128xf32>
    tpu.vector_store %arg2[%c1_15, %c0_16, %c0_17], %31 {strides = array<i32>} : memref<4x48x128xf32, #tpu.memory_space<vmem>>, vector<1x48x128xf32>,
    %c2_18 = arith.constant 2 : index
    %c0_19 = arith.constant 0 : index
    %c0_20 = arith.constant 0 : index
    %32 = vector.load %arg2[%c2_18, %c0_19, %c0_20] : memref<4x48x128xf32, #tpu.memory_space<vmem>>, vector<1x48x128xf32>
    %33 = vector.shape_cast %32 : vector<1x48x128xf32> to vector<48x128xf32>
    %34 = vector.shape_cast %24 : vector<48x128xf32> to vector<1x48x128xf32>
    tpu.vector_store %arg2[%c2_18, %c0_19, %c0_20], %34 {strides = array<i32>} : memref<4x48x128xf32, #tpu.memory_space<vmem>>, vector<1x48x128xf32>,
    %c3_21 = arith.constant 3 : index
    %c0_22 = arith.constant 0 : index
    %c0_23 = arith.constant 0 : index
    %35 = vector.load %arg2[%c3_21, %c0_22, %c0_23] : memref<4x48x128xf32, #tpu.memory_space<vmem>>, vector<1x48x128xf32>
    %36 = vector.shape_cast %35 : vector<1x48x128xf32> to vector<48x128xf32>
    %37 = vector.shape_cast %25 : vector<48x128xf32> to vector<1x48x128xf32>
    tpu.vector_store %arg2[%c3_21, %c0_22, %c0_23], %37 {strides = array<i32>} : memref<4x48x128xf32, #tpu.memory_space<vmem>>, vector<1x48x128xf32>,
    return
  }
  func.func @transform_0(%arg0: i32) -> (i32, i32, i32) {
    %c0_i32 = arith.constant 0 : i32
    %c0_i32_0 = arith.constant 0 : i32
    %c0_i32_1 = arith.constant 0 : i32
    return %c0_i32, %arg0, %c0_i32_0 : i32, i32, i32
  }
  func.func @transform_1(%arg0: i32) -> (i32, i32, i32) {
    %c0_i32 = arith.constant 0 : i32
    %c0_i32_0 = arith.constant 0 : i32
    %c0_i32_1 = arith.constant 0 : i32
    return %c0_i32, %arg0, %c0_i32_0 : i32, i32, i32
  }
}

</mosaic_0001>

<llo_original>
// kernel: tpu_custom_call.1
$region0: #{tpu_custom_call.1}
  #allocation0 [shape = 'u32[]', space=smem, size = 0x4, offset = 0x4, fixed_abs, tag = 'smem constant byte address 0x4 - core index']
  #allocation1 [shape = 'u32[72,128]{1,0:T(1,128)}', space=vmem, size = 0x9000, scoped, tag = 'internal scratch']
  %s0 = inlined_call_operand.hbm [shape: f32[6,48,128], index: 0, kind: input, shape index: {}]
  %s1 = inlined_call_operand.hbm [shape: f32[4,48,128], index: 1, kind: output, shape index: {}]
  %s2 = sld [smem:[#allocation0]]
  $region18: #{tpu_custom_call.1} parent=0
    _
  %s4 = ssub.s32 1, %s2
  %s5 = scalar_select 0, %s4, %s2
  $region1: #{tpu_custom_call.1} parent=0
    #allocation2 [shape = 'u8[147456]{0}', space=vmem, size = 0x24000, scoped, tag = 'input window, operand 0, single buffered']
    #allocation3 [shape = 's32[1]{0}', space=sflag, size = 0x4, scoped, tag = 'scoped memory for tpu_custom_call.1']
    #allocation4 [shape = 's32[1]{0}', space=sflag, size = 0x4, scoped, tag = 'scoped memory for tpu_custom_call.1']
    #allocation5 [shape = 'u8[98304]{0}', space=vmem, size = 0x18000, scoped, tag = 'output window, operand 0, single buffered']
    %6 = vsyncpa [#allocation3], 0
    %7 = vsyncpa [#allocation4], 0
    // Predicated region
    $region2: #{tpu_custom_call.1} parent=1 // pred_check
      _
    $region3: #{tpu_custom_call.1} parent=1 // pred_check_branch
      %9 = sbr.rel (0) target = $region5
    $region4: #{tpu_custom_call.1} parent=1 // pred_region
      %11 = vsyncadd [#allocation3], 0
      %s12 = sshll.u32 %s0, 4
      %s13 = int_to_ptr.hbm [resolvable:$true] %s12
      %s14 = sshll.u32 [#allocation2], 4
      %s15 = int_to_ptr.vmem [resolvable:$true] %s14
      %20 = dma.hbm_to_vmem [thread:$0]  %s13, 4608, %s15, [#allocation3], 128, 128, 8
    $region5: #{tpu_custom_call.1} parent=1 // pred_fallthru
      _
    // Predicated region
    $region6: #{tpu_custom_call.1} parent=1 // pred_check
      _
    $region7: #{tpu_custom_call.1} parent=1 // pred_check_branch
      %22 = sbr.rel (0) target = $region9
    $region8: #{tpu_custom_call.1} parent=1 // pred_region
      %24 = dma.done [#allocation3], 4608
    $region9: #{tpu_custom_call.1} parent=1 // pred_fallthru
      _
    %v25 = vld [vmem:[#allocation2] sm:$0xff]
    %v26 = vld [vmem:[#allocation2 + $0x8] sm:$0xff]
    %v27 = vld [vmem:[#allocation2 + $0x10] sm:$0xff]
    %v28 = vld [vmem:[#allocation2 + $0x18] sm:$0xff]
    %v29 = vld [vmem:[#allocation2 + $0x20] sm:$0xff]
    %v30 = vld [vmem:[#allocation2 + $0x28] sm:$0xff]
    %s31 = scalar_lea.vmem [#allocation2], 48
    %v32 = vld [vmem:[%s31] sm:$0xff]
    %v33 = vld [vmem:[%s31 + $0x8] sm:$0xff]
    %v34 = vld [vmem:[%s31 + $0x10] sm:$0xff]
    %v35 = vld [vmem:[%s31 + $0x18] sm:$0xff]
    %v36 = vld [vmem:[%s31 + $0x20] sm:$0xff]
    %v37 = vld [vmem:[%s31 + $0x28] sm:$0xff]
    %s38 = scalar_lea.vmem [#allocation2], 96
    %v39 = vld [vmem:[%s38] sm:$0xff]
    %v40 = vld [vmem:[%s38 + $0x8] sm:$0xff]
    %v41 = vld [vmem:[%s38 + $0x10] sm:$0xff]
    %v42 = vld [vmem:[%s38 + $0x18] sm:$0xff]
    %v43 = vld [vmem:[%s38 + $0x20] sm:$0xff]
    %v44 = vld [vmem:[%s38 + $0x28] sm:$0xff]
    %s45 = scalar_lea.vmem [#allocation2], 144
    %v46 = vld [vmem:[%s45] sm:$0xff]
    %v47 = vld [vmem:[%s45 + $0x8] sm:$0xff]
    %v48 = vld [vmem:[%s45 + $0x10] sm:$0xff]
    %v49 = vld [vmem:[%s45 + $0x18] sm:$0xff]
    %v50 = vld [vmem:[%s45 + $0x20] sm:$0xff]
    %v51 = vld [vmem:[%s45 + $0x28] sm:$0xff]
    %s52 = scalar_lea.vmem [#allocation2], 192
    %v53 = vld [vmem:[%s52] sm:$0xff]
    %v54 = vld [vmem:[%s52 + $0x8] sm:$0xff]
    %v55 = vld [vmem:[%s52 + $0x10] sm:$0xff]
    %v56 = vld [vmem:[%s52 + $0x18] sm:$0xff]
    %v57 = vld [vmem:[%s52 + $0x20] sm:$0xff]
    %v58 = vld [vmem:[%s52 + $0x28] sm:$0xff]
    %s59 = scalar_lea.vmem [#allocation2], 240
    %v60 = vld [vmem:[%s59] sm:$0xff]
    %v61 = vld [vmem:[%s59 + $0x8] sm:$0xff]
    %v62 = vld [vmem:[%s59 + $0x10] sm:$0xff]
    %v63 = vld [vmem:[%s59 + $0x18] sm:$0xff]
    %v64 = vld [vmem:[%s59 + $0x20] sm:$0xff]
    %v65 = vld [vmem:[%s59 + $0x28] sm:$0xff]
    %v66 = vmul.f32 %v53, %v46
    %v67 = vmul.f32 %v54, %v47
    %v68 = vmul.f32 %v55, %v48
    %v69 = vmul.f32 %v56, %v49
    %v70 = vmul.f32 %v57, %v50
    %v71 = vmul.f32 %v58, %v51
    %v72 = vand.u32 2147483647, %v66
    %v73 = vand.u32 2147483647, %v67
    %v74 = vand.u32 2147483647, %v68
    %v75 = vand.u32 2147483647, %v69
    %v76 = vand.u32 2147483647, %v70
    %v77 = vand.u32 2147483647, %v71
    %v78 = vmul.f32 %v60, %v39
    %v79 = vmul.f32 %v61, %v40
    %v80 = vmul.f32 %v62, %v41
    %v81 = vmul.f32 %v63, %v42
    %v82 = vmul.f32 %v64, %v43
    %v83 = vmul.f32 %v65, %v44
    %v84 = vand.u32 2147483647, %v78
    %v85 = vand.u32 2147483647, %v79
    %v86 = vand.u32 2147483647, %v80
    %v87 = vand.u32 2147483647, %v81
    %v88 = vand.u32 2147483647, %v82
    %v89 = vand.u32 2147483647, %v83
    %v90 = vadd.f32 %v72, %v84
    %v91 = vadd.f32 %v73, %v85
    %v92 = vadd.f32 %v74, %v86
    %v93 = vadd.f32 %v75, %v87
    %v94 = vadd.f32 %v76, %v88
    %v95 = vadd.f32 %v77, %v89
    %v96 = vmul.f32 %v60, %v46
    %v97 = vmul.f32 %v61, %v47
    %v98 = vmul.f32 %v62, %v48
    %v99 = vmul.f32 %v63, %v49
    %v100 = vmul.f32 %v64, %v50
    %v101 = vmul.f32 %v65, %v51
    %v102 = vand.u32 2147483647, %v96
    %v103 = vand.u32 2147483647, %v97
    %v104 = vand.u32 2147483647, %v98
    %v105 = vand.u32 2147483647, %v99
    %v106 = vand.u32 2147483647, %v100
    %v107 = vand.u32 2147483647, %v101
    %v108 = vmul.f32 %v53, %v39
    %v109 = vmul.f32 %v54, %v40
    %v110 = vmul.f32 %v55, %v41
    %v111 = vmul.f32 %v56, %v42
    %v112 = vmul.f32 %v57, %v43
    %v113 = vmul.f32 %v58, %v44
    %v114 = vand.u32 2147483647, %v108
    %v115 = vand.u32 2147483647, %v109
    %v116 = vand.u32 2147483647, %v110
    %v117 = vand.u32 2147483647, %v111
    %v118 = vand.u32 2147483647, %v112
    %v119 = vand.u32 2147483647, %v113
    %v120 = vadd.f32 %v102, %v114
    %v121 = vadd.f32 %v103, %v115
    %v122 = vadd.f32 %v104, %v116
    %v123 = vadd.f32 %v105, %v117
    %v124 = vadd.f32 %v106, %v118
    %v125 = vadd.f32 %v107, %v119
    %v126 = vsub.f32 %v25, %v90
    %v127 = vsub.f32 %v26, %v91
    %v128 = vsub.f32 %v27, %v92
    %v129 = vsub.f32 %v28, %v93
    %v130 = vsub.f32 %v29, %v94
    %v131 = vsub.f32 %v30, %v95
    %v132 = vsub.f32 %v32, %v120
    %v133 = vsub.f32 %v33, %v121
    %v134 = vsub.f32 %v34, %v122
    %v135 = vsub.f32 %v35, %v123
    %v136 = vsub.f32 %v36, %v124
    %v137 = vsub.f32 %v37, %v125
    %v138 = vadd.f32 %v25, %v90
    %v139 = vadd.f32 %v26, %v91
    %v140 = vadd.f32 %v27, %v92
    %v141 = vadd.f32 %v28, %v93
    %v142 = vadd.f32 %v29, %v94
    %v143 = vadd.f32 %v30, %v95
    %v144 = vadd.f32 %v32, %v120
    %v145 = vadd.f32 %v33, %v121
    %v146 = vadd.f32 %v34, %v122
    %v147 = vadd.f32 %v35, %v123
    %v148 = vadd.f32 %v36, %v124
    %v149 = vadd.f32 %v37, %v125
    %150 = vst [vmem:[#allocation5] sm:$0xff] %v126
    %151 = vst [vmem:[#allocation5 + $0x8] sm:$0xff] %v127
    %152 = vst [vmem:[#allocation5 + $0x10] sm:$0xff] %v128
    %153 = vst [vmem:[#allocation5 + $0x18] sm:$0xff] %v129
    %154 = vst [vmem:[#allocation5 + $0x20] sm:$0xff] %v130
    %155 = vst [vmem:[#allocation5 + $0x28] sm:$0xff] %v131
    %s156 = scalar_lea.vmem [#allocation5], 48
    %157 = vst [vmem:[%s156] sm:$0xff] %v132
    %158 = vst [vmem:[%s156 + $0x8] sm:$0xff] %v133
    %159 = vst [vmem:[%s156 + $0x10] sm:$0xff] %v134
    %160 = vst [vmem:[%s156 + $0x18] sm:$0xff] %v135
    %161 = vst [vmem:[%s156 + $0x20] sm:$0xff] %v136
    %162 = vst [vmem:[%s156 + $0x28] sm:$0xff] %v137
    %s163 = scalar_lea.vmem [#allocation5], 96
    %164 = vst [vmem:[%s163] sm:$0xff] %v138
    %165 = vst [vmem:[%s163 + $0x8] sm:$0xff] %v139
    %166 = vst [vmem:[%s163 + $0x10] sm:$0xff] %v140
    %167 = vst [vmem:[%s163 + $0x18] sm:$0xff] %v141
    %168 = vst [vmem:[%s163 + $0x20] sm:$0xff] %v142
    %169 = vst [vmem:[%s163 + $0x28] sm:$0xff] %v143
    %s170 = scalar_lea.vmem [#allocation5], 144
    %171 = vst [vmem:[%s170] sm:$0xff] %v144
    %172 = vst [vmem:[%s170 + $0x8] sm:$0xff] %v145
    %173 = vst [vmem:[%s170 + $0x10] sm:$0xff] %v146
    %174 = vst [vmem:[%s170 + $0x18] sm:$0xff] %v147
    %175 = vst [vmem:[%s170 + $0x20] sm:$0xff] %v148
    %176 = vst [vmem:[%s170 + $0x28] sm:$0xff] %v149
    // Predicated region
    $region10: #{tpu_custom_call.1} parent=1 // pred_check
      _
    $region11: #{tpu_custom_call.1} parent=1 // pred_check_branch
      %178 = sbr.rel (0) target = $region13
    $region12: #{tpu_custom_call.1} parent=1 // pred_region
      %180 = vsyncadd [#allocation4], 0
      %s181 = sshll.u32 [#allocation5], 4
      %s182 = int_to_ptr.vmem [resolvable:$true] %s181
      %s183 = sshll.u32 %s1, 4
      %s184 = int_to_ptr.hbm [resolvable:$true] %s183
      %189 = dma.vmem_to_hbm [thread:$0]  %s182, 3072, %s184, [#allocation4], 128, 128, 8
    $region13: #{tpu_custom_call.1} parent=1 // pred_fallthru
      _
    // Predicated region
    $region14: #{tpu_custom_call.1} parent=1 // pred_check
      _
    $region15: #{tpu_custom_call.1} parent=1 // pred_check_branch
      %191 = sbr.rel (0) target = $region17
    $region16: #{tpu_custom_call.1} parent=1 // pred_region
      %193 = dma.done [#allocation4], 3072
    $region17: #{tpu_custom_call.1} parent=1 // pred_fallthru
      _
    %194 = vsyncpa [#allocation3], 1
    %195 = vsyncpa [#allocation4], 1

</llo_original>
